<compile_context>
chip_gen: v5e
topology: v5e:2x2
jax: 0.10.0
libtpu: 0.0.40
codegen_flags: <defaults>
</compile_context>

<pallas_src>
import math

import jax
import jax.numpy as jnp
from jax.experimental import pallas as pl
from jax.experimental.pallas import tpu as pltpu

_MIB = 1024 * 1024


def _round_up(x, n):
    return (x + n - 1) // n * n


# ---------------------------------------------------------------------------
# Kernels.  Grid = (n_m, n_n, n_k): rows ("parallel"), out-cols ("parallel"),
# hidden ("arbitrary", innermost reduction axis).
# ---------------------------------------------------------------------------
def _ffn_kernel_inplace(x_ref, w1_ref, b1_ref, w2_ref, b2_ref, o_ref):
    # o_ref is f32 and its block index is constant across k, so it stays
    # VMEM-resident for the whole hidden loop; accumulate into it directly
    # (saves a tm x tn x 4B scratch -- the biggest VMEM lever on v7x).
    k = pl.program_id(2)

    @pl.when(k == 0)
    def _init():
        o_ref[...] = jnp.zeros_like(o_ref)

    h = jnp.dot(x_ref[...], w1_ref[...], preferred_element_type=jnp.float32)
    h = jnp.maximum(h + b1_ref[...], 0.0)  # bias + ReLU in f32 on the VPU
    o_ref[...] += jnp.dot(
        h.astype(w2_ref.dtype), w2_ref[...], preferred_element_type=jnp.float32
    )

    @pl.when(k == pl.num_programs(2) - 1)
    def _finalize():
        o_ref[...] += b2_ref[...]  # b2 added exactly once


def _ffn_kernel_scratch(x_ref, w1_ref, b1_ref, w2_ref, b2_ref, o_ref, acc_ref):
    # Narrow output dtype: accumulate in an f32 scratch, cast once at the end
    # (output block is then half-width in VMEM and on the HBM writeback).
    k = pl.program_id(2)

    @pl.when(k == 0)
    def _init():
        acc_ref[...] = jnp.zeros_like(acc_ref)

    h = jnp.dot(x_ref[...], w1_ref[...], preferred_element_type=jnp.float32)
    h = jnp.maximum(h + b1_ref[...], 0.0)
    acc_ref[...] += jnp.dot(
        h.astype(w2_ref.dtype), w2_ref[...], preferred_element_type=jnp.float32
    )

    @pl.when(k == pl.num_programs(2) - 1)
    def _finalize():
        o_ref[...] = (acc_ref[...] + b2_ref[...]).astype(o_ref.dtype)


# ---------------------------------------------------------------------------
# Configuration: generation-aware tile sizes + VMEM limit.
# ---------------------------------------------------------------------------
def _vmem_capacity_bytes():
    try:
        return int(pltpu.get_tpu_info().vmem_capacity_bytes)
    except Exception:
        return 64 * _MIB  # conservative (v7x-class) fallback


def _derive_tiles(d_in_p, d_hid, d_out, compute_dtype, tm=None, tk=None, tn=None):
    cap = _vmem_capacity_bytes()
    if cap >= 96 * _MIB:  # v5e / v6e: 128 MiB VMEM per core
        tm_d, tk_d, tn_d = 1024, 1024, 2048
        vmem_limit = 104 * _MIB
    else:  # v7x-class: 64 MiB VMEM per core
        tm_d, tk_d, tn_d = 512, 512, 1024
        vmem_limit = max(32 * _MIB, min(cap, 64 * _MIB) - 12 * _MIB)

    tm = tm_d if tm is None else tm
    tk = tk_d if tk is None else tk
    tn = tn_d if tn is None else tn

    # Clamp feature tiles to the (128-rounded) problem size, keep 128 multiples;
    # row tile rounded to 16 (bf16 sublane pack).
    tk = max(128, min(_round_up(tk, 128), _round_up(d_hid, 128)))
    tn = max(128, min(_round_up(tn, 128), _round_up(d_out, 128)))
    tm = max(16, _round_up(tm, 16))

    cb = jnp.dtype(compute_dtype).itemsize

    def vmem_need(tm_, tk_, tn_):
        return (
            2 * tm_ * d_in_p * cb      # x blocks (double buffered)
            + 2 * d_in_p * tk_ * cb    # W1 blocks
            + 2 * 8 * tk_ * 4          # b1 blocks (sublane-padded)
            + 2 * tk_ * tn_ * cb       # W2 blocks
            + 2 * 8 * tn_ * 4          # b2 blocks
            + 2 * tm_ * tn_ * 4        # f32 out blocks (== bf16 out + f32 acc)
            + tm_ * tk_ * 4            # fused (tm, tk) f32 intermediate
        )

    budget = int(vmem_limit * 0.85)  # headroom for Mosaic internal scratch
    while vmem_need(tm, tk, tn) > budget:
        if tk > 256:
            tk = max(256, _round_up(tk // 2, 128))
        elif tn > 256:
            tn = max(256, _round_up(tn // 2, 128))
        elif tm > 256:
            tm = max(256, _round_up(tm // 2, 16))
        else:
            break
    return tm, tk, tn, int(vmem_limit)


def prepare_ffn_params(w1, b1, w2, b2, *, compute_dtype=jnp.bfloat16,
                       tm=None, tk=None, tn=None):
    """Pad + cast the FFN parameters ONCE (call at parameter-load time).

    w1: (d_in, d_hid), b1: (d_hid,), w2: (d_hid, d_out), b2: (d_out,).
    Weights go to `compute_dtype` (MXU operands); biases stay f32 (VPU path).
    """
    d_in, d_hid = w1.shape
    d_out = w2.shape[1]
    d_in_p = _round_up(d_in, 128)

    tm, tk, tn, vmem_limit = _derive_tiles(
        d_in_p, d_hid, d_out, compute_dtype, tm=tm, tk=tk, tn=tn)

    # Pad hidden / output dims UP to a tile multiple: padded W1 columns and b1
    # entries are zero -> relu(x@0 + 0) == 0, and the padded W2 rows are zero,
    # so the extra hidden columns contribute exactly nothing.
    d_hid_p = _round_up(d_hid, tk)
    d_out_p = _round_up(d_out, tn)

    w1p = jnp.pad(jnp.asarray(w1), ((0, d_in_p - d_in), (0, d_hid_p - d_hid)))
    b1p = jnp.pad(jnp.asarray(b1).reshape(1, d_hid), ((0, 0), (0, d_hid_p - d_hid)))
    w2p = jnp.pad(jnp.asarray(w2), ((0, d_hid_p - d_hid), (0, d_out_p - d_out)))
    b2p = jnp.pad(jnp.asarray(b2).reshape(1, d_out), ((0, 0), (0, d_out_p - d_out)))

    return dict(
        w1=w1p.astype(compute_dtype), b1=b1p.astype(jnp.float32),
        w2=w2p.astype(compute_dtype), b2=b2p.astype(jnp.float32),
        d_in=d_in, d_hid=d_hid, d_out=d_out,
        d_in_p=d_in_p, d_hid_p=d_hid_p, d_out_p=d_out_p,
        tm=tm, tk=tk, tn=tn,
        compute_dtype=jnp.dtype(compute_dtype),
        vmem_limit_bytes=vmem_limit,
    )


def position_wise_ffn(x, params, *, out_dtype=None):
    """x: (..., d_in) -> (..., d_out). Matches dense2(relu(dense1(x)))."""
    p = params
    d_in, d_out = p["d_in"], p["d_out"]
    assert x.shape[-1] == d_in, "feature dim mismatch"
    out_dtype = jnp.dtype(x.dtype if out_dtype is None else out_dtype)

    lead = x.shape[:-1]
    m = 1
    for s in lead:
        m *= s

    d_in_p, d_hid_p, d_out_p = p["d_in_p"], p["d_hid_p"], p["d_out_p"]
    tk, tn = p["tk"], p["tn"]

    # Row tile: as big as config allows, clamped to the problem, multiple of 16.
    tm = min(p["tm"], _round_up(m, 16))
    m_p = _round_up(m, tm)

    x2 = x.reshape(m, d_in).astype(p["compute_dtype"])
    if (m_p - m) or (d_in_p - d_in):  # skip the pad when already aligned
        x2 = jnp.pad(x2, ((0, m_p - m), (0, d_in_p - d_in)))

    n_m, n_n, n_k = m_p // tm, d_out_p // tn, d_hid_p // tk
    grid = (n_m, n_n, n_k)

    in_specs = [
        pl.BlockSpec((tm, d_in_p), lambda i, j, k: (i, 0)),
        pl.BlockSpec((d_in_p, tk), lambda i, j, k: (0, k)),
        pl.BlockSpec((1, tk), lambda i, j, k: (0, k)),
        pl.BlockSpec((tk, tn), lambda i, j, k: (k, j)),
        pl.BlockSpec((1, tn), lambda i, j, k: (0, j)),
    ]
    out_spec = pl.BlockSpec((tm, tn), lambda i, j, k: (i, j))

    if out_dtype == jnp.dtype(jnp.float32):
        kernel = _ffn_kernel_inplace
        scratch_shapes = []
    else:
        kernel = _ffn_kernel_scratch
        scratch_shapes = [pltpu.VMEM((tm, tn), jnp.float32)]

    cb = p["compute_dtype"].itemsize
    cost = pl.CostEstimate(
        flops=2 * m_p * d_in_p * d_hid_p + 2 * m_p * d_hid_p * d_out_p,
        transcendentals=0,
        bytes_accessed=(m_p * d_in_p * cb
                        + d_in_p * d_hid_p * cb
                        + d_hid_p * d_out_p * cb
                        + m_p * d_out_p * out_dtype.itemsize),
    )

    out2 = pl.pallas_call(
        kernel,
        out_shape=jax.ShapeDtypeStruct((m_p, d_out_p), out_dtype),
        grid_spec=pltpu.PrefetchScalarGridSpec(
            num_scalar_prefetch=0,
            grid=grid,
            in_specs=in_specs,
            out_specs=out_spec,
            scratch_shapes=scratch_shapes,
        ),
        compiler_params=pltpu.CompilerParams(
            dimension_semantics=("parallel", "parallel", "arbitrary"),
            vmem_limit_bytes=p["vmem_limit_bytes"],
        ),
        cost_estimate=cost,
    )(x2, p["w1"], p["b1"], p["w2"], p["b2"])

    return out2[:m, :d_out].reshape(lead + (d_out,))


def _init_linear(key, fan_in, fan_out):
    """nn.Linear default init: U(-1/sqrt(fan_in), 1/sqrt(fan_in)); W as (in, out)."""
    kw, kb = jax.random.split(key)
    bound = 1.0 / math.sqrt(fan_in)
    w = jax.random.uniform(kw, (fan_in, fan_out), jnp.float32, -bound, bound)
    b = jax.random.uniform(kb, (fan_out,), jnp.float32, -bound, bound)
    return w, b


if __name__ == "__main__":
    key = jax.random.PRNGKey(0)

    # --- Test 1: module-sized shapes (batch=2, seq=8, 32 -> 64 -> 32). -------
    batch, seq = 2, 8
    d_in, d_hid, d_out = 32, 64, 32
    kx, k1, k2, k3 = jax.random.split(key, 4)
    x = jax.random.normal(kx, (batch, seq, d_in), jnp.float32)
    w1, b1 = _init_linear(k1, d_in, d_hid)
    w2, b2 = _init_linear(k2, d_hid, d_out)
    ref = jnp.maximum(x @ w1 + b1, 0.0) @ w2 + b2

    # f32 compute path -> tight check; exercises accumulate-into-output kernel.
    params_f32 = prepare_ffn_params(w1, b1, w2, b2, compute_dtype=jnp.float32)
    out_f32 = jax.block_until_ready(position_wise_ffn(x, params_f32))
    assert out_f32.shape == (batch, seq, d_out)
    assert jnp.allclose(out_f32, ref, atol=1e-4, rtol=1e-4)

    # Default bf16 MXU operands, bf16 output -> loose check; exercises the
    # f32-accumulator-scratch kernel and the half-width output writeback.
    params_bf16 = prepare_ffn_params(w1, b1, w2, b2)
    out_bf16 = jax.block_until_ready(
        position_wise_ffn(x, params_bf16, out_dtype=jnp.bfloat16))
    assert out_bf16.shape == (batch, seq, d_out)
    assert jnp.allclose(out_bf16.astype(jnp.float32), ref, atol=5e-2, rtol=5e-2)

    # --- Test 2: small multi-tile case (awkward, non-128 sizes) to exercise --
    # the m / n / k grid axes and the hidden-dim accumulation path.
    bb, ss = 2, 24
    d_in2, d_hid2, d_out2 = 96, 320, 200
    xb = jax.random.normal(k3, (bb, ss, d_in2), jnp.float32)
    kw1, kw2 = jax.random.split(jax.random.fold_in(key, 7))
    w1b, b1b = _init_linear(kw1, d_in2, d_hid2)
    w2b, b2b = _init_linear(kw2, d_hid2, d_out2)
    refb = jnp.maximum(xb @ w1b + b1b, 0.0) @ w2b + b2b
    params_b = prepare_ffn_params(w1b, b1b, w2b, b2b, compute_dtype=jnp.float32,
                                  tm=16, tk=128, tn=128)   # force n_m=3,n_n=2,n_k=3
    outb = jax.block_until_ready(position_wise_ffn(xb, params_b))
    assert outb.shape == (bb, ss, d_out2)
    assert jnp.allclose(outb, refb, atol=1e-3, rtol=1e-3)

    print("KERNEL_OK")
</pallas_src>

<mosaic_0001>
module attributes {stable_mosaic.version = 11 : i64} {
  func.func @_ffn_kernel_inplace(%arg0: i32, %arg1: i32, %arg2: i32, %arg3: memref<16x128xf32, #tpu.memory_space<vmem>>, %arg4: memref<128x128xf32, #tpu.memory_space<vmem>>, %arg5: memref<1x128xf32, #tpu.memory_space<vmem>>, %arg6: memref<128x128xf32, #tpu.memory_space<vmem>>, %arg7: memref<1x128xf32, #tpu.memory_space<vmem>>, %arg8: memref<16x128xf32, #tpu.memory_space<vmem>>) attributes {dimension_semantics = [#tpu.dimension_semantics<parallel>, #tpu.dimension_semantics<parallel>, #tpu.dimension_semantics<arbitrary>], iteration_bounds = array<i64: 1, 1, 1>, scalar_prefetch = 0 : i64, scratch_operands = 0 : i64, tpu.core_type = #tpu.core_type<tc>, window_params = [{transform_indices = @transform_0, window_bounds = array<i64: 16, 128>}, {transform_indices = @transform_1, window_bounds = array<i64: 128, 128>}, {transform_indices = @transform_2, window_bounds = array<i64: 1, 128>}, {transform_indices = @transform_3, window_bounds = array<i64: 128, 128>}, {transform_indices = @transform_4, window_bounds = array<i64: 1, 128>}, {transform_indices = @transform_5, window_bounds = array<i64: 16, 128>}]} {
    %c0_i32 = arith.constant 0 : i32
    %0 = arith.cmpi eq, %arg2, %c0_i32 : i32
    %1 = arith.extui %0 : i1 to i32
    %c0_i32_0 = arith.constant 0 : i32
    %2 = arith.cmpi ne, %1, %c0_i32_0 : i32
    scf.if %2 {
      %cst_16 = arith.constant 0.000000e+00 : f32
      %19 = vector.broadcast %cst_16 : f32 to vector<16x128xf32>
      %c0_17 = arith.constant 0 : index
      %c0_18 = arith.constant 0 : index
      %20 = vector.load %arg8[%c0_17, %c0_18] : memref<16x128xf32, #tpu.memory_space<vmem>>, vector<16x128xf32>
      tpu.vector_store %arg8[%c0_17, %c0_18], %19 {strides = array<i32>} : memref<16x128xf32, #tpu.memory_space<vmem>>, vector<16x128xf32>,
    } else {
    }
    %c0 = arith.constant 0 : index
    %c0_1 = arith.constant 0 : index
    %3 = vector.load %arg3[%c0, %c0_1] : memref<16x128xf32, #tpu.memory_space<vmem>>, vector<16x128xf32>
    %c0_2 = arith.constant 0 : index
    %c0_3 = arith.constant 0 : index
    %4 = vector.load %arg4[%c0_2, %c0_3] : memref<128x128xf32, #tpu.memory_space<vmem>>, vector<128x128xf32>
    %cst = arith.constant dense<0.000000e+00> : vector<16x128xf32>
    %5 = tpu.matmul %3, %4, %cst {dimension_numbers = #tpu.dot_dimension_numbers<[1], [0], [0], [1], [0, 0, 1, 1], [], []>} : vector<16x128xf32>, vector<128x128xf32>, vector<16x128xf32> -> vector<16x128xf32>
    %c0_4 = arith.constant 0 : index
    %c0_5 = arith.constant 0 : index
    %6 = vector.load %arg5[%c0_4, %c0_5] : memref<1x128xf32, #tpu.memory_space<vmem>>, vector<1x128xf32>
    %7 = vector.broadcast %6 : vector<1x128xf32> to vector<16x128xf32>
    %8 = arith.addf %5, %7 : vector<16x128xf32>
    %cst_6 = arith.constant 0.000000e+00 : f32
    %9 = vector.broadcast %cst_6 : f32 to vector<16x128xf32>
    %10 = arith.maximumf %8, %9 : vector<16x128xf32>
    %c0_7 = arith.constant 0 : index
    %c0_8 = arith.constant 0 : index
    %11 = vector.load %arg8[%c0_7, %c0_8] : memref<16x128xf32, #tpu.memory_space<vmem>>, vector<16x128xf32>
    %c0_9 = arith.constant 0 : index
    %c0_10 = arith.constant 0 : index
    %12 = vector.load %arg6[%c0_9, %c0_10] : memref<128x128xf32, #tpu.memory_space<vmem>>, vector<128x128xf32>
    %cst_11 = arith.constant dense<0.000000e+00> : vector<16x128xf32>
    %13 = tpu.matmul %10, %12, %cst_11 {dimension_numbers = #tpu.dot_dimension_numbers<[1], [0], [0], [1], [0, 0, 1, 1], [], []>} : vector<16x128xf32>, vector<128x128xf32>, vector<16x128xf32> -> vector<16x128xf32>
    %14 = arith.addf %11, %13 : vector<16x128xf32>
    %c0_12 = arith.constant 0 : index
    %c0_13 = arith.constant 0 : index
    %15 = vector.load %arg8[%c0_12, %c0_13] : memref<16x128xf32, #tpu.memory_space<vmem>>, vector<16x128xf32>
    tpu.vector_store %arg8[%c0_12, %c0_13], %14 {strides = array<i32>} : memref<16x128xf32, #tpu.memory_space<vmem>>, vector<16x128xf32>,
    %c0_i32_14 = arith.constant 0 : i32
    %16 = arith.cmpi eq, %arg2, %c0_i32_14 : i32
    %17 = arith.extui %16 : i1 to i32
    %c0_i32_15 = arith.constant 0 : i32
    %18 = arith.cmpi ne, %17, %c0_i32_15 : i32
    scf.if %18 {
      %c0_16 = arith.constant 0 : index
      %c0_17 = arith.constant 0 : index
      %19 = vector.load %arg8[%c0_16, %c0_17] : memref<16x128xf32, #tpu.memory_space<vmem>>, vector<16x128xf32>
      %c0_18 = arith.constant 0 : index
      %c0_19 = arith.constant 0 : index
      %20 = vector.load %arg7[%c0_18, %c0_19] : memref<1x128xf32, #tpu.memory_space<vmem>>, vector<1x128xf32>
      %21 = vector.broadcast %20 : vector<1x128xf32> to vector<16x128xf32>
      %22 = arith.addf %19, %21 : vector<16x128xf32>
      %c0_20 = arith.constant 0 : index
      %c0_21 = arith.constant 0 : index
      %23 = vector.load %arg8[%c0_20, %c0_21] : memref<16x128xf32, #tpu.memory_space<vmem>>, vector<16x128xf32>
      tpu.vector_store %arg8[%c0_20, %c0_21], %22 {strides = array<i32>} : memref<16x128xf32, #tpu.memory_space<vmem>>, vector<16x128xf32>,
    } else {
    }
    return
  }
  func.func @transform_0(%arg0: i32, %arg1: i32, %arg2: i32) -> (i32, i32) {
    %c0_i32 = arith.constant 0 : i32
    %c0_i32_0 = arith.constant 0 : i32
    return %arg0, %c0_i32 : i32, i32
  }
  func.func @transform_1(%arg0: i32, %arg1: i32, %arg2: i32) -> (i32, i32) {
    %c0_i32 = arith.constant 0 : i32
    %c0_i32_0 = arith.constant 0 : i32
    return %c0_i32, %arg2 : i32, i32
  }
  func.func @transform_2(%arg0: i32, %arg1: i32, %arg2: i32) -> (i32, i32) {
    %c0_i32 = arith.constant 0 : i32
    %c0_i32_0 = arith.constant 0 : i32
    return %c0_i32, %arg2 : i32, i32
  }
  func.func @transform_3(%arg0: i32, %arg1: i32, %arg2: i32) -> (i32, i32) {
    %c0_i32 = arith.constant 0 : i32
    return %arg2, %arg1 : i32, i32
  }
  func.func @transform_4(%arg0: i32, %arg1: i32, %arg2: i32) -> (i32, i32) {
    %c0_i32 = arith.constant 0 : i32
    %c0_i32_0 = arith.constant 0 : i32
    return %c0_i32, %arg1 : i32, i32
  }
  func.func @transform_5(%arg0: i32, %arg1: i32, %arg2: i32) -> (i32, i32) {
    %c0_i32 = arith.constant 0 : i32
    return %arg0, %arg1 : i32, i32
  }
}

</mosaic_0001>

<llo_original>
// kernel: tpu_custom_call.1
$region0: #{tpu_custom_call.1}
  #allocation0 [shape = 'u32[]', space=smem, size = 0x4, offset = 0x4, fixed_abs, tag = 'smem constant byte address 0x4 - core index']
  #allocation1 [shape = 'u32[72,128]{1,0:T(1,128)}', space=vmem, size = 0x9000, scoped, tag = 'internal scratch']
  %s0 = inlined_call_operand.hbm [shape: f32[16,128], index: 0, kind: input, shape index: {}]
  %s1 = inlined_call_operand.hbm [shape: f32[128,128], index: 1, kind: input, shape index: {}]
  %s2 = inlined_call_operand.vmem [shape: f32[1,128], index: 2, kind: input, shape index: {}]
  %s3 = inlined_call_operand.hbm [shape: f32[128,128], index: 3, kind: input, shape index: {}]
  %s4 = inlined_call_operand.vmem [shape: f32[1,128], index: 4, kind: input, shape index: {}]
  %s5 = inlined_call_operand.hbm [shape: f32[16,128], index: 5, kind: output, shape index: {}]
  %s6 = sld [smem:[#allocation0]]
  $region50: #{tpu_custom_call.1} parent=0
    _
  %s8 = ssub.s32 1, %s6
  %s9 = scalar_select 0, %s8, %s6
  $region1: #{tpu_custom_call.1} parent=0
    #allocation2 [shape = 'u8[8192]{0}', space=vmem, size = 0x2000, scoped, tag = 'input window, operand 0, single buffered']
    #allocation3 [shape = 's32[1]{0}', space=sflag, size = 0x4, scoped, tag = 'scoped memory for tpu_custom_call.1']
    #allocation4 [shape = 's32[1]{0}', space=sflag, size = 0x4, scoped, tag = 'scoped memory for tpu_custom_call.1']
    #allocation5 [shape = 'u8[65536]{0}', space=vmem, size = 0x10000, scoped, tag = 'input window, operand 1, single buffered']
    #allocation6 [shape = 's32[1]{0}', space=sflag, size = 0x4, scoped, tag = 'scoped memory for tpu_custom_call.1']
    #allocation7 [shape = 'u8[65536]{0}', space=vmem, size = 0x10000, scoped, tag = 'input window, operand 3, single buffered']
    #allocation8 [shape = 'u8[8192]{0}', space=vmem, size = 0x2000, scoped, tag = 'output window, operand 0, single buffered']
    %10 = vsyncpa [#allocation3], 0
    %11 = vsyncpa [#allocation6], 0
    %12 = vsyncpa [#allocation4], 0
    // Predicated region
    $region2: #{tpu_custom_call.1} parent=1 // pred_check
      _
    $region3: #{tpu_custom_call.1} parent=1 // pred_check_branch
      %14 = sbr.rel (0) target = $region5
    $region4: #{tpu_custom_call.1} parent=1 // pred_region
      %16 = vsyncadd [#allocation3], 0
      %s17 = sshll.u32 %s0, 4
      %s18 = int_to_ptr.hbm [resolvable:$true] %s17
      %s19 = sshll.u32 [#allocation2], 4
      %s20 = int_to_ptr.vmem [resolvable:$true] %s19
      %25 = dma.hbm_to_vmem [thread:$0]  %s18, 256, %s20, [#allocation3], 128, 128, 8
    $region5: #{tpu_custom_call.1} parent=1 // pred_fallthru
      _
    // Predicated region
    $region6: #{tpu_custom_call.1} parent=1 // pred_check
      _
    $region7: #{tpu_custom_call.1} parent=1 // pred_check_branch
      %27 = sbr.rel (0) target = $region9
    $region8: #{tpu_custom_call.1} parent=1 // pred_region
      %29 = vsyncadd [#allocation6], 0
      %s30 = sshll.u32 %s1, 4
      %s31 = int_to_ptr.hbm [resolvable:$true] %s30
      %s32 = sshll.u32 [#allocation5], 4
      %s33 = int_to_ptr.vmem [resolvable:$true] %s32
      %38 = dma.hbm_to_vmem [thread:$0]  %s31, 2048, %s33, [#allocation6], 128, 128, 8
    $region9: #{tpu_custom_call.1} parent=1 // pred_fallthru
      _
    // Predicated region
    $region10: #{tpu_custom_call.1} parent=1 // pred_check
      _
    $region11: #{tpu_custom_call.1} parent=1 // pred_check_branch
      %40 = sbr.rel (0) target = $region13
    $region12: #{tpu_custom_call.1} parent=1 // pred_region
      _
    $region13: #{tpu_custom_call.1} parent=1 // pred_fallthru
      _
    // Predicated region
    $region14: #{tpu_custom_call.1} parent=1 // pred_check
      _
    $region15: #{tpu_custom_call.1} parent=1 // pred_check_branch
      %42 = sbr.rel (0) target = $region17
    $region16: #{tpu_custom_call.1} parent=1 // pred_region
      %44 = vsyncadd [#allocation6], 0
      %s45 = sshll.u32 %s3, 4
      %s46 = int_to_ptr.hbm [resolvable:$true] %s45
      %s47 = sshll.u32 [#allocation7], 4
      %s48 = int_to_ptr.vmem [resolvable:$true] %s47
      %53 = dma.hbm_to_vmem [thread:$0]  %s46, 2048, %s48, [#allocation6], 128, 128, 8
    $region17: #{tpu_custom_call.1} parent=1 // pred_fallthru
      _
    // Predicated region
    $region18: #{tpu_custom_call.1} parent=1 // pred_check
      _
    $region19: #{tpu_custom_call.1} parent=1 // pred_check_branch
      %55 = sbr.rel (0) target = $region21
    $region20: #{tpu_custom_call.1} parent=1 // pred_region
      _
    $region21: #{tpu_custom_call.1} parent=1 // pred_fallthru
      _
    // Predicated region
    $region22: #{tpu_custom_call.1} parent=1 // pred_check
      _
    $region23: #{tpu_custom_call.1} parent=1 // pred_check_branch
      %57 = sbr.rel (0) target = $region25
    $region24: #{tpu_custom_call.1} parent=1 // pred_region
      %59 = dma.done [#allocation3], 256
    $region25: #{tpu_custom_call.1} parent=1 // pred_fallthru
      _
    // Predicated region
    $region26: #{tpu_custom_call.1} parent=1 // pred_check
      _
    $region27: #{tpu_custom_call.1} parent=1 // pred_check_branch
      %61 = sbr.rel (0) target = $region29
    $region28: #{tpu_custom_call.1} parent=1 // pred_region
      %63 = dma.done [#allocation6], 2048
    $region29: #{tpu_custom_call.1} parent=1 // pred_fallthru
      _
    // Predicated region
    $region30: #{tpu_custom_call.1} parent=1 // pred_check
      _
    $region31: #{tpu_custom_call.1} parent=1 // pred_check_branch
      %65 = sbr.rel (0) target = $region33
    $region32: #{tpu_custom_call.1} parent=1 // pred_region
      %67 = dma.done [#allocation6], 2048
    $region33: #{tpu_custom_call.1} parent=1 // pred_fallthru
      _
    %p68 = scmp.eq.s32.totalorder 0, 0
    // Predicated region
    $region34: #{tpu_custom_call.1} parent=1 // pred_check
      %p69 = pneg %p68
    $region35: #{tpu_custom_call.1} parent=1 // pred_check_branch
      %71 = sbr.rel (%p69) target = $region37
    $region36: #{tpu_custom_call.1} parent=1 // pred_region
      %72 = vst [vmem:[#allocation8] sm:$0xff] 0.0
      %73 = vst [vmem:[#allocation8 + $0x8] sm:$0xff] 0.0
    $region37: #{tpu_custom_call.1} parent=1 // pred_fallthru
      _
    %v74 = vld [vmem:[#allocation2] sm:$0xff]
    %v75 = vld [vmem:[#allocation2 + $0x8] sm:$0xff]
    %v76 = vld [vmem:[#allocation5] sm:$0xff]
    %v77 = vld [vmem:[#allocation5 + $0x8] sm:$0xff]
    %v78 = vld [vmem:[#allocation5 + $0x10] sm:$0xff]
    %v79 = vld [vmem:[#allocation5 + $0x18] sm:$0xff]
    %v80 = vld [vmem:[#allocation5 + $0x20] sm:$0xff]
    %v81 = vld [vmem:[#allocation5 + $0x28] sm:$0xff]
    %v82 = vld [vmem:[#allocation5 + $0x30] sm:$0xff]
    %v83 = vld [vmem:[#allocation5 + $0x38] sm:$0xff]
    %v84 = vld [vmem:[#allocation5 + $0x40] sm:$0xff]
    %v85 = vld [vmem:[#allocation5 + $0x48] sm:$0xff]
    %v86 = vld [vmem:[#allocation5 + $0x50] sm:$0xff]
    %v87 = vld [vmem:[#allocation5 + $0x58] sm:$0xff]
    %v88 = vld [vmem:[#allocation5 + $0x60] sm:$0xff]
    %v89 = vld [vmem:[#allocation5 + $0x68] sm:$0xff]
    %v90 = vld [vmem:[#allocation5 + $0x70] sm:$0xff]
    %v91 = vld [vmem:[#allocation5 + $0x78] sm:$0xff]
    %v92 = vld [vmem:[%s2] sm:$0x1]
    %v94 = vperm.slane %v92, 0
    %96 = vmatpush.msra.mxu0 %v91
    %97 = vmatpush.msra.mxu0 %v90
    %98 = vmatpush.msra.mxu0 %v89
    %99 = vmatpush.msra.mxu0 %v88
    %100 = vmatpush.msra.mxu0 %v87
    %101 = vmatpush.msra.mxu0 %v86
    %102 = vmatpush.msra.mxu0 %v85
    %103 = vmatpush.msra.mxu0 %v84
    %104 = vmatpush.msra.mxu0 %v83
    %105 = vmatpush.msra.mxu0 %v82
    %106 = vmatpush.msra.mxu0 %v81
    %107 = vmatpush.msra.mxu0 %v80
    %108 = vmatpush.msra.mxu0 %v79
    %109 = vmatpush.msra.mxu0 %v78
    %110 = vmatpush.msra.mxu0 %v77
    %111 = vmatpush.msra.mxu0 %v76
    %112 = vmatmul.f32.gmra.mxu0 %v74
    %v113 = vpop.f32.mrf.mxu0
    %v114 = vadd.f32 %v94, %v113
    %115 = vmatmul.f32.gmra.mxu0 %v75
    %v116 = vpop.f32.mrf.mxu0
    %v117 = vadd.f32 %v94, %v116
    %118 = vdwg.mxu0
    %v119 = vmax.f32 %v114, 0.0
    %v120 = vmax.f32 %v117, 0.0
    %v121 = vld [vmem:[#allocation8] sm:$0xff]
    %v122 = vld [vmem:[#allocation8 + $0x8] sm:$0xff]
    %v123 = vld [vmem:[#allocation7] sm:$0xff]
    %v124 = vld [vmem:[#allocation7 + $0x8] sm:$0xff]
    %v125 = vld [vmem:[#allocation7 + $0x10] sm:$0xff]
    %v126 = vld [vmem:[#allocation7 + $0x18] sm:$0xff]
    %v127 = vld [vmem:[#allocation7 + $0x20] sm:$0xff]
    %v128 = vld [vmem:[#allocation7 + $0x28] sm:$0xff]
    %v129 = vld [vmem:[#allocation7 + $0x30] sm:$0xff]
    %v130 = vld [vmem:[#allocation7 + $0x38] sm:$0xff]
    %v131 = vld [vmem:[#allocation7 + $0x40] sm:$0xff]
    %v132 = vld [vmem:[#allocation7 + $0x48] sm:$0xff]
    %v133 = vld [vmem:[#allocation7 + $0x50] sm:$0xff]
    %v134 = vld [vmem:[#allocation7 + $0x58] sm:$0xff]
    %v135 = vld [vmem:[#allocation7 + $0x60] sm:$0xff]
    %v136 = vld [vmem:[#allocation7 + $0x68] sm:$0xff]
    %v137 = vld [vmem:[#allocation7 + $0x70] sm:$0xff]
    %v138 = vld [vmem:[#allocation7 + $0x78] sm:$0xff]
    %139 = vmatpush.msra.mxu0 %v138
    %140 = vmatpush.msra.mxu0 %v137
    %141 = vmatpush.msra.mxu0 %v136
    %142 = vmatpush.msra.mxu0 %v135
    %143 = vmatpush.msra.mxu0 %v134
    %144 = vmatpush.msra.mxu0 %v133
    %145 = vmatpush.msra.mxu0 %v132
    %146 = vmatpush.msra.mxu0 %v131
    %147 = vmatpush.msra.mxu0 %v130
    %148 = vmatpush.msra.mxu0 %v129
    %149 = vmatpush.msra.mxu0 %v128
    %150 = vmatpush.msra.mxu0 %v127
    %151 = vmatpush.msra.mxu0 %v126
    %152 = vmatpush.msra.mxu0 %v125
    %153 = vmatpush.msra.mxu0 %v124
    %154 = vmatpush.msra.mxu0 %v123
    %155 = vmatmul.f32.gmra.mxu0 %v119
    %v156 = vpop.f32.mrf.mxu0
    %v157 = vadd.f32 0.0, %v156
    %158 = vmatmul.f32.gmra.mxu0 %v120
    %v159 = vpop.f32.mrf.mxu0
    %v160 = vadd.f32 0.0, %v159
    %161 = vdwg.mxu0
    %v162 = vadd.f32 %v121, %v157
    %v163 = vadd.f32 %v122, %v160
    %164 = vst [vmem:[#allocation8] sm:$0xff] %v162
    %165 = vst [vmem:[#allocation8 + $0x8] sm:$0xff] %v163
    // Predicated region
    $region38: #{tpu_custom_call.1} parent=1 // pred_check
      %p166 = pneg %p68
    $region39: #{tpu_custom_call.1} parent=1 // pred_check_branch
      %168 = sbr.rel (%p166) target = $region41
    $region40: #{tpu_custom_call.1} parent=1 // pred_region
      %v169 = vld [vmem:[#allocation8] sm:$0xff]
      %v170 = vld [vmem:[#allocation8 + $0x8] sm:$0xff]
      %v171 = vld [vmem:[%s4] sm:$0x1]
      %v173 = vperm.slane %v171, 0
      %v175 = vadd.f32 %v169, %v173
      %v176 = vadd.f32 %v170, %v173
      %177 = vst [vmem:[#allocation8] sm:$0xff] %v175
      %178 = vst [vmem:[#allocation8 + $0x8] sm:$0xff] %v176
    $region41: #{tpu_custom_call.1} parent=1 // pred_fallthru
      _
    // Predicated region
    $region42: #{tpu_custom_call.1} parent=1 // pred_check
      _
    $region43: #{tpu_custom_call.1} parent=1 // pred_check_branch
      %180 = sbr.rel (0) target = $region45
    $region44: #{tpu_custom_call.1} parent=1 // pred_region
      %182 = vsyncadd [#allocation4], 0
      %s183 = sshll.u32 [#allocation8], 4
      %s184 = int_to_ptr.vmem [resolvable:$true] %s183
      %s185 = sshll.u32 %s5, 4
      %s186 = int_to_ptr.hbm [resolvable:$true] %s185
      %191 = dma.vmem_to_hbm [thread:$0]  %s184, 256, %s186, [#allocation4], 128, 128, 8
    $region45: #{tpu_custom_call.1} parent=1 // pred_fallthru
      _
    // Predicated region
    $region46: #{tpu_custom_call.1} parent=1 // pred_check
      _
    $region47: #{tpu_custom_call.1} parent=1 // pred_check_branch
      %193 = sbr.rel (0) target = $region49
    $region48: #{tpu_custom_call.1} parent=1 // pred_region
      %195 = dma.done [#allocation4], 256
    $region49: #{tpu_custom_call.1} parent=1 // pred_fallthru
      _
    %196 = vsyncpa [#allocation3], 1
    %197 = vsyncpa [#allocation6], 1
    %198 = vsyncpa [#allocation4], 1

</llo_original>
